<compile_context>
chip_gen: v7x
topology: tpu7x:2x2x1
jax: 0.10.0
libtpu: 0.0.40
codegen_flags: <defaults>
</compile_context>

<pallas_src>
import functools
import math

import jax
import jax.numpy as jnp
from jax.experimental import pallas as pl
from jax.experimental.pallas import tpu as pltpu

LANES = 128


def _ce_kernel(x_ref, t_ref, out_ref, acc_ref, *, tail_len):
    """One (batch, spatial-outer, spatial-inner) grid step."""
    si = pl.program_id(2)

    @pl.when(si == 0)
    def _():
        acc_ref[...] = jnp.zeros_like(acc_ref)

    num_classes, tile_s = x_ref.shape[1], x_ref.shape[2]
    x = x_ref[0]                      # (C, TILE_S), native dtype (no f32 copy)
    t = t_ref[0]                      # (1, TILE_S) int32 class indices

    # Per-lane log-sum-exp over the class (sublane) axis.  max and the
    # compare/select are exact in the native dtype; only the exp argument and
    # the narrow (1, TILE_S) arithmetic are promoted to f32.
    x_max = jnp.max(x, axis=0, keepdims=True)                        # (1, TILE_S)
    ex = jnp.exp((x - x_max).astype(jnp.float32))                    # (C, TILE_S) f32
    lse = x_max.astype(jnp.float32) + jnp.log(
        jnp.sum(ex, axis=0, keepdims=True))                          # (1, TILE_S)

    # Gather the logit at the target class: (C, 1) iota broadcast against the
    # (1, TILE_S) targets; exactly one nonzero per lane so the sum is exact in
    # the native dtype.
    # TODO(synk): targets outside [0, C) (e.g. ignore_index=-100) are not
    # ignored -- they contribute `lse` to the loss (library defaults assumed).
    cls_ids = jax.lax.broadcasted_iota(jnp.int32, (num_classes, 1), 0)
    picked = jnp.sum(
        jnp.where(cls_ids == t, x, jnp.zeros((), x.dtype)),
        axis=0, keepdims=True).astype(jnp.float32)                   # (1, TILE_S)

    contrib = lse - picked                                           # (1, TILE_S) f32

    if tail_len is None:
        # spatial % tile_s == 0: no ragged tail, no per-step masking work.
        acc_ref[...] += contrib
    else:
        # Only the very last spatial block is ragged.  Garbage lanes in that
        # block never leave their lane (max/lse/picked are all per-lane) and
        # are discarded by the select, so no explicit zero-fill is needed --
        # but do NOT add any cross-lane op before this mask.
        is_last = jnp.logical_and(si == pl.num_programs(2) - 1,
                                  pl.program_id(1) == pl.num_programs(1) - 1)

        @pl.when(jnp.logical_not(is_last))
        def _():
            acc_ref[...] += contrib

        @pl.when(is_last)
        def _():
            lane_ids = jax.lax.broadcasted_iota(jnp.int32, (1, tile_s), 1)
            acc_ref[...] += jnp.where(lane_ids < tail_len, contrib, 0.0)

    @pl.when(si == pl.num_programs(2) - 1)
    def _():
        out_ref[...] = jnp.sum(acc_ref[...]).reshape(1, 1, 1)


def _tpu_vmem_capacity_bytes():
    try:
        info = pltpu.get_tpu_info()
        cap = getattr(info, "vmem_capacity_bytes", None)
        if cap:
            return int(cap)
    except Exception:
        pass
    return 64 * 1024 * 1024   # conservative (v7x-sized) fallback


def cross_entropy_loss(logits, target):
    """Equivalent of nn.CrossEntropyLoss(reduction='mean') with class-index targets."""
    # TODO(synk): soft (probability) targets, class weights and ignore_index of
    # nn.CrossEntropyLoss are not implemented (library defaults assumed).
    assert logits.ndim >= 2
    n, c = logits.shape[0], logits.shape[1]
    spatial = math.prod(logits.shape[2:]) if logits.ndim > 2 else 1
    assert target.shape == (n,) + tuple(logits.shape[2:])

    t_flat = target.reshape(n, spatial).astype(jnp.int32)

    if spatial < LANES:
        # Plain classification / tiny spatial: the (C, spatial) layout would
        # use <128 lanes per block.  Fold batch into lanes instead (one extra
        # HBM transpose pass, then fully lane-dense kernel blocks).
        x3 = jnp.transpose(logits.reshape(n, c, spatial), (1, 0, 2)).reshape(
            1, c, n * spatial)
        t3 = t_flat.reshape(1, 1, n * spatial)
        n_eff, spatial_eff = 1, n * spatial
    else:
        x3 = logits.reshape(n, c, spatial)
        t3 = t_flat.reshape(n, 1, spatial)
        n_eff, spatial_eff = n, spatial

    itemsize = x3.dtype.itemsize

    # Per-generation tile / VMEM budget: bigger blocks amortize the ~0.35 us
    # per-step overhead; v7x-class chips only have 64 MiB VMEM per TC.
    vmem_cap = _tpu_vmem_capacity_bytes()
    if vmem_cap <= 64 * 1024 * 1024:
        target_tile_bytes = 4 * 1024 * 1024
        vmem_limit = 44 * 1024 * 1024
    else:
        target_tile_bytes = 8 * 1024 * 1024
        vmem_limit = 96 * 1024 * 1024

    # Spatial tile: ~target_tile_bytes of logits per block (native dtype,
    # upcast happens in-kernel only inside the exp argument), lane aligned.
    # TODO(synk): add a class-chunked streaming-LSE path for vocab-scale C
    # (the class axis is untiled, so C*128*itemsize must fit in VMEM today).
    tile_s = target_tile_bytes // (c * itemsize)
    tile_s = max(LANES, (tile_s // LANES) * LANES)
    if spatial_eff <= tile_s:
        tile_s = spatial_eff
    n_s_tiles = pl.cdiv(spatial_eff, tile_s)
    tail = spatial_eff - (n_s_tiles - 1) * tile_s
    tail_len = None if tail == tile_s else tail

    # Split the spatial tiles into (outer parallel, inner arbitrary) so both
    # TensorCores on v7x get work even when N == 1 (no-op on 1-TC chips).
    n_so = 2 if (n_eff == 1 and n_s_tiles % 2 == 0 and n_s_tiles >= 2) else 1
    n_si = n_s_tiles // n_so

    kernel = functools.partial(_ce_kernel, tail_len=tail_len)

    cost = pl.CostEstimate(
        flops=5 * n_eff * c * spatial_eff,
        transcendentals=n_eff * c * spatial_eff + n_eff * spatial_eff,
        bytes_accessed=(n_eff * c * spatial_eff * itemsize
                        + n_eff * spatial_eff * 4 + n_eff * n_so * 4),
    )

    partial_sums = pl.pallas_call(
        kernel,
        out_shape=jax.ShapeDtypeStruct((n_eff * n_so, 1, 1), jnp.float32),
        grid_spec=pltpu.PrefetchScalarGridSpec(
            num_scalar_prefetch=0,
            grid=(n_eff, n_so, n_si),
            in_specs=[
                pl.BlockSpec((1, c, tile_s),
                             lambda i, so, si: (i, 0, so * n_si + si)),
                pl.BlockSpec((1, 1, tile_s),
                             lambda i, so, si: (i, 0, so * n_si + si)),
            ],
            out_specs=pl.BlockSpec((1, 1, 1),
                                   lambda i, so, si: (i * n_so + so, 0, 0)),
            scratch_shapes=[pltpu.VMEM((1, tile_s), jnp.float32)],
        ),
        compiler_params=pltpu.CompilerParams(
            dimension_semantics=("parallel", "parallel", "arbitrary"),
            vmem_limit_bytes=vmem_limit,
        ),
        cost_estimate=cost,
    )(x3, t3)

    return jnp.sum(partial_sums) / (n * spatial)


if __name__ == "__main__":
    key = jax.random.PRNGKey(0)
    k1, k2, k3, k4 = jax.random.split(key, 4)

    # Segmentation-shaped case (NCHW): batch=2, classes=4, spatial 16x16.
    n, c, h, w = 2, 4, 16, 16
    logits = jax.random.normal(k1, (n, c, h, w), dtype=jnp.float32)
    target = jax.random.randint(k2, (n, h, w), 0, c, dtype=jnp.int32)
    loss = jax.block_until_ready(cross_entropy_loss(logits, target))
    log_p = jax.nn.log_softmax(logits, axis=1)
    ref = -jnp.mean(jnp.take_along_axis(log_p, target[:, None], axis=1))
    assert jnp.allclose(loss, ref, atol=1e-5, rtol=1e-5), (loss, ref)

    # Plain (N, C) classification case (exercises the lane-dense small-spatial path).
    n2, c2 = 8, 5
    logits2 = jax.random.normal(k3, (n2, c2), dtype=jnp.float32)
    target2 = jax.random.randint(k4, (n2,), 0, c2, dtype=jnp.int32)
    loss2 = jax.block_until_ready(cross_entropy_loss(logits2, target2))
    log_p2 = jax.nn.log_softmax(logits2, axis=1)
    ref2 = -jnp.mean(jnp.take_along_axis(log_p2, target2[:, None], axis=1)[:, 0])
    assert jnp.allclose(loss2, ref2, atol=1e-5, rtol=1e-5), (loss2, ref2)

    print("KERNEL_OK")
</pallas_src>

<mosaic_0001>
module attributes {stable_mosaic.version = 11 : i64} {
  func.func @_ce_kernel(%arg0: i32, %arg1: i32, %arg2: i32, %arg3: memref<1x4x256xf32, #tpu.memory_space<vmem>>, %arg4: memref<1x1x256xi32, #tpu.memory_space<vmem>>, %arg5: memref<1x1x1xf32, #tpu.memory_space<vmem>>, %arg6: memref<1x256xf32, #tpu.memory_space<vmem>>) attributes {dimension_semantics = [#tpu.dimension_semantics<parallel>, #tpu.dimension_semantics<parallel>, #tpu.dimension_semantics<arbitrary>], iteration_bounds = array<i64: 2, 1, 1>, scalar_prefetch = 0 : i64, scratch_operands = 1 : i64, tpu.core_type = #tpu.core_type<tc>, window_params = [{transform_indices = @transform_0, window_bounds = array<i64: 1, 4, 256>}, {transform_indices = @transform_1, window_bounds = array<i64: 1, 1, 256>}, {transform_indices = @transform_2, window_bounds = array<i64: 1, 1, 1>}]} {
    %c0_i32 = arith.constant 0 : i32
    %0 = arith.cmpi eq, %arg2, %c0_i32 : i32
    %1 = arith.extui %0 : i1 to i32
    %c0_i32_0 = arith.constant 0 : i32
    %2 = arith.cmpi ne, %1, %c0_i32_0 : i32
    scf.if %2 {
      %cst_15 = arith.constant 0.000000e+00 : f32
      %31 = vector.broadcast %cst_15 : f32 to vector<1x256xf32>
      %c0_16 = arith.constant 0 : index
      %c0_17 = arith.constant 0 : index
      %32 = vector.load %arg6[%c0_16, %c0_17] : memref<1x256xf32, #tpu.memory_space<vmem>>, vector<1x256xf32>
      tpu.vector_store %arg6[%c0_16, %c0_17], %31 {strides = array<i32>} : memref<1x256xf32, #tpu.memory_space<vmem>>, vector<1x256xf32>,
    } else {
    }
    %c0 = arith.constant 0 : index
    %c0_1 = arith.constant 0 : index
    %c0_2 = arith.constant 0 : index
    %3 = vector.load %arg3[%c0, %c0_1, %c0_2] : memref<1x4x256xf32, #tpu.memory_space<vmem>>, vector<1x4x256xf32>
    %4 = vector.shape_cast %3 : vector<1x4x256xf32> to vector<4x256xf32>
    %c0_3 = arith.constant 0 : index
    %c0_4 = arith.constant 0 : index
    %c0_5 = arith.constant 0 : index
    %5 = vector.load %arg4[%c0_3, %c0_4, %c0_5] : memref<1x1x256xi32, #tpu.memory_space<vmem>>, vector<1x1x256xi32>
    %6 = vector.shape_cast %5 : vector<1x1x256xi32> to vector<1x256xi32>
    %cst = arith.constant dense<0xFF800000> : vector<256xf32>
    %7 = vector.multi_reduction <maximumf>, %4, %cst [0] : vector<4x256xf32> to vector<256xf32>
    %8 = vector.shape_cast %7 : vector<256xf32> to vector<1x256xf32>
    %9 = vector.broadcast %8 : vector<1x256xf32> to vector<4x256xf32>
    %10 = arith.subf %4, %9 : vector<4x256xf32>
    %11 = math.exp %10 : vector<4x256xf32>
    %cst_6 = arith.constant dense<0.000000e+00> : vector<256xf32>
    %12 = vector.multi_reduction <add>, %11, %cst_6 [0] : vector<4x256xf32> to vector<256xf32>
    %13 = vector.shape_cast %12 : vector<256xf32> to vector<1x256xf32>
    %14 = math.log %13 : vector<1x256xf32>
    %15 = arith.addf %8, %14 : vector<1x256xf32>
    %16 = tpu.iota {dimensions = array<i32: 0>} : vector<4x1xi32>
    %17 = vector.broadcast %16 : vector<4x1xi32> to vector<4x256xi32>
    %18 = vector.broadcast %6 : vector<1x256xi32> to vector<4x256xi32>
    %19 = arith.cmpi eq, %17, %18 : vector<4x256xi32>
    %cst_7 = arith.constant 0.000000e+00 : f32
    %20 = vector.broadcast %cst_7 : f32 to vector<4x256xf32>
    %21 = arith.select %19, %4, %20 : vector<4x256xi1>, vector<4x256xf32>
    %cst_8 = arith.constant dense<0.000000e+00> : vector<256xf32>
    %22 = vector.multi_reduction <add>, %21, %cst_8 [0] : vector<4x256xf32> to vector<256xf32>
    %23 = vector.shape_cast %22 : vector<256xf32> to vector<1x256xf32>
    %24 = arith.subf %15, %23 : vector<1x256xf32>
    %c0_9 = arith.constant 0 : index
    %c0_10 = arith.constant 0 : index
    %25 = vector.load %arg6[%c0_9, %c0_10] : memref<1x256xf32, #tpu.memory_space<vmem>>, vector<1x256xf32>
    %26 = arith.addf %25, %24 : vector<1x256xf32>
    %c0_11 = arith.constant 0 : index
    %c0_12 = arith.constant 0 : index
    %27 = vector.load %arg6[%c0_11, %c0_12] : memref<1x256xf32, #tpu.memory_space<vmem>>, vector<1x256xf32>
    tpu.vector_store %arg6[%c0_11, %c0_12], %26 {strides = array<i32>} : memref<1x256xf32, #tpu.memory_space<vmem>>, vector<1x256xf32>,
    %c0_i32_13 = arith.constant 0 : i32
    %28 = arith.cmpi eq, %arg2, %c0_i32_13 : i32
    %29 = arith.extui %28 : i1 to i32
    %c0_i32_14 = arith.constant 0 : i32
    %30 = arith.cmpi ne, %29, %c0_i32_14 : i32
    scf.if %30 {
      %c0_15 = arith.constant 0 : index
      %c0_16 = arith.constant 0 : index
      %31 = vector.load %arg6[%c0_15, %c0_16] : memref<1x256xf32, #tpu.memory_space<vmem>>, vector<1x256xf32>
      %32 = vector.shape_cast %31 : vector<1x256xf32> to vector<1x1x256xf32>
      %cst_17 = arith.constant dense<0.000000e+00> : vector<1xf32>
      %33 = vector.multi_reduction <add>, %32, %cst_17 [1, 2] : vector<1x1x256xf32> to vector<1xf32>
      %34 = vector.shape_cast %33 : vector<1xf32> to vector<1x1x1xf32>
      %35 = vector.extract %34[0, 0, 0] : f32 from vector<1x1x1xf32>
      %36 = vector.broadcast %35 : f32 to vector<1x1x1xf32>
      %c0_18 = arith.constant 0 : index
      %c0_19 = arith.constant 0 : index
      %c0_20 = arith.constant 0 : index
      %37 = vector.load %arg5[%c0_18, %c0_19, %c0_20] : memref<1x1x1xf32, #tpu.memory_space<vmem>>, vector<1x1x1xf32>
      tpu.vector_store %arg5[%c0_18, %c0_19, %c0_20], %36 {strides = array<i32>} : memref<1x1x1xf32, #tpu.memory_space<vmem>>, vector<1x1x1xf32>,
    } else {
    }
    return
  }
  func.func @transform_0(%arg0: i32, %arg1: i32, %arg2: i32) -> (i32, i32, i32) {
    %c1_i32 = arith.constant 1 : i32
    %0 = arith.muli %arg1, %c1_i32 : i32
    %1 = arith.addi %0, %arg2 : i32
    %c0_i32 = arith.constant 0 : i32
    %c0_i32_0 = arith.constant 0 : i32
    return %arg0, %c0_i32, %1 : i32, i32, i32
  }
  func.func @transform_1(%arg0: i32, %arg1: i32, %arg2: i32) -> (i32, i32, i32) {
    %c1_i32 = arith.constant 1 : i32
    %0 = arith.muli %arg1, %c1_i32 : i32
    %1 = arith.addi %0, %arg2 : i32
    %c0_i32 = arith.constant 0 : i32
    %c0_i32_0 = arith.constant 0 : i32
    return %arg0, %c0_i32, %1 : i32, i32, i32
  }
  func.func @transform_2(%arg0: i32, %arg1: i32, %arg2: i32) -> (i32, i32, i32) {
    %c1_i32 = arith.constant 1 : i32
    %0 = arith.muli %arg0, %c1_i32 : i32
    %1 = arith.addi %0, %arg1 : i32
    %c0_i32 = arith.constant 0 : i32
    %c0_i32_0 = arith.constant 0 : i32
    %c0_i32_1 = arith.constant 0 : i32
    return %1, %c0_i32, %c0_i32_0 : i32, i32, i32
  }
}

</mosaic_0001>

<llo_original>
// kernel: tpu_custom_call.1
$region0: #{tpu_custom_call.1}
  #allocation0 [shape = 'u32[]', space=smem, size = 0x4, offset = 0x4, fixed_abs, tag = 'smem constant byte address 0x4 - core index']
  #allocation1 [shape = 'u32[144,128]{1,0:T(1,128)}', space=vmem, size = 0x12000, scoped, tag = 'internal scratch']
  #allocation2 [shape = 'f32[1,256]{1,0:T(1,128)}', space=vmem, size = 0x400, scoped, tag = 'scratch operand']
  %s0 = inlined_call_operand.hbm [shape: f32[2,4,256], index: 0, kind: input, shape index: {}]
  %s1 = inlined_call_operand.hbm [shape: s32[2,1,256], index: 1, kind: input, shape index: {}]
  %s2 = inlined_call_operand.vmem [shape: f32[2,1,1], index: 2, kind: output, shape index: {}]
  %s3 = sld [smem:[#allocation0]]
  $region57: #{tpu_custom_call.1} parent=0
    _
  %s5 = ssub.s32 1, %s3
  %s6 = scalar_select 0, %s5, %s3
  $region1: #{tpu_custom_call.1} parent=0
    #allocation3 [shape = 'u8[8192]{0}', space=vmem, size = 0x2000, scoped, tag = 'input window, operand 0']
    #allocation4 [shape = 's32[2]{0}', space=sflag, size = 0x8, scoped, tag = 'scoped memory for tpu_custom_call.1']
    #allocation5 [shape = 'u8[2048]{0}', space=vmem, size = 0x800, scoped, tag = 'input window, operand 1']
    #allocation6 [shape = 's32[2]{0}', space=sflag, size = 0x8, scoped, tag = 'scoped memory for tpu_custom_call.1']
    %7 = vsyncpa [#allocation4], 0
    %s8 = scalar_lea.sflag [#allocation4], 1
    %9 = vsyncpa %s8, 0
    %10 = vsyncpa [#allocation6], 0
    %s11 = scalar_lea.sflag [#allocation6], 1
    %12 = vsyncpa %s11, 0
    loop: start=0, step=1, limit=4
    $region2: #{tpu_custom_call.1} parent=1 // loop_pre_header
      _
    $region3: #{tpu_custom_call.1} parent=1 // loop_header
      %s14 = sphi 0, %s18
      %p15 = scmp.ge.s32.totalorder %s14, 4
      %s21 = sphi 0, %s40
      %s22 = sphi 0, %s36
      %s23 = sphi 0, %s32
      %s24 = sphi 0, %s21
      %s25 = sphi 0, %s22
      %s26 = sphi 0, %s23
      %s27 = sphi 0, %s24
      %s28 = sphi 0, %s25
      %s29 = sphi 0, %s26
      %s47 = sphi 0, %s49
      %s50 = sphi 0, %s47
      %s51 = sphi 0, %s50
      %s67 = sphi 0, %s51
      %s77 = sphi 0, %s79
      %s80 = sphi 0, %s77
      %s81 = sphi 0, %s80
      %s97 = sphi 0, %s81
      %s105 = sphi 0, %s107
      %s108 = sphi 0, %s105
      %s109 = sphi 0, %s108
      %s125 = sphi 0, %s109
    $region4: #{tpu_custom_call.1} parent=1 // loop_header_branch
      %17 = sbr.rel (%p15) target = $region8
    $region5: #{tpu_custom_call.1} parent=1 // loop_body
      %s19 = ssub.s32 %s14, 1
      %s20 = ssub.s32 %s14, 2
      %s30 = sadd.s32 1, %s23
      %p31 = scmp.ge.s32.totalorder %s30, 1
      %s32 = scalar_select %p31, 0, %s30
      %s33 = sadd.s32 1, %s22
      %s34 = scalar_select %p31, %s33, %s22
      %p35 = scmp.ge.s32.totalorder %s34, 1
      %s36 = scalar_select %p35, 0, %s34
      %s37 = sadd.s32 1, %s21
      %s38 = scalar_select %p35, %s37, %s21
      %p39 = scmp.ge.s32.totalorder %s38, 2
      %s40 = scalar_select %p39, 0, %s38
      %s41 = sadd.s32 %s22, %s23
      %s42 = sadd.s32 %s36, %s32
      %s43 = ssub.s32 %s21, %s40
      %s44 = ssub.s32 %s41, %s42
      %s45 = sor.u32 %s43, %s44
      %p46 = scmp.eq.s32.totalorder %s45, 0
      %s48 = sadd.s32 %s47, 1
      %s49 = scalar_select %p46, %s47, %s48
      %p52 = pneg %p46
      %p53 = scmp.eq.s32.totalorder %s14, 1
      %p54 = por %p52, %p53
      %p55 = scmp.ne.s32.totalorder %s47, %s50
      %p56 = scmp.eq.s32.totalorder %s14, 0
      %p57 = por %p55, %p56
      %p58 = scmp.ne.s32.totalorder %s47, %s50
      %p59 = scmp.eq.s32.totalorder %s19, 1
      %p60 = por %p58, %p59
      %p61 = scmp.ne.s32.totalorder %s50, %s51
      %p62 = scmp.eq.s32.totalorder %s19, 0
      %p63 = por %p61, %p62
      %p64 = scmp.ne.s32.totalorder %s50, %s51
      %p65 = scmp.eq.s32.totalorder %s20, 1
      %p66 = por %p64, %p65
      %p68 = scmp.ne.s32.totalorder %s51, %s67
      %p69 = scmp.eq.s32.totalorder %s20, 0
      %p70 = por %p68, %p69
      %s71 = sadd.s32 %s22, %s23
      %s72 = sadd.s32 %s36, %s32
      %s73 = ssub.s32 %s21, %s40
      %s74 = ssub.s32 %s71, %s72
      %s75 = sor.u32 %s73, %s74
      %p76 = scmp.eq.s32.totalorder %s75, 0
      %s78 = sadd.s32 %s77, 1
      %s79 = scalar_select %p76, %s77, %s78
      %p82 = pneg %p76
      %p83 = scmp.eq.s32.totalorder %s14, 1
      %p84 = por %p82, %p83
      %p85 = scmp.ne.s32.totalorder %s77, %s80
      %p86 = scmp.eq.s32.totalorder %s14, 0
      %p87 = por %p85, %p86
      %p88 = scmp.ne.s32.totalorder %s77, %s80
      %p89 = scmp.eq.s32.totalorder %s19, 1
      %p90 = por %p88, %p89
      %p91 = scmp.ne.s32.totalorder %s80, %s81
      %p92 = scmp.eq.s32.totalorder %s19, 0
      %p93 = por %p91, %p92
      %p94 = scmp.ne.s32.totalorder %s80, %s81
      %p95 = scmp.eq.s32.totalorder %s20, 1
      %p96 = por %p94, %p95
      %p98 = scmp.ne.s32.totalorder %s81, %s97
      %p99 = scmp.eq.s32.totalorder %s20, 0
      %p100 = por %p98, %p99
      %s101 = sadd.s32 %s21, %s22
      %s102 = sadd.s32 %s40, %s36
      %s103 = ssub.s32 %s101, %s102
      %p104 = scmp.eq.s32.totalorder %s103, 0
      %s106 = sadd.s32 %s105, 1
      %s107 = scalar_select %p104, %s105, %s106
      %p110 = pneg %p104
      %p111 = scmp.eq.s32.totalorder %s14, 1
      %p112 = por %p110, %p111
      %p113 = scmp.ne.s32.totalorder %s105, %s108
      %p114 = scmp.eq.s32.totalorder %s14, 0
      %p115 = por %p113, %p114
      %p116 = scmp.ne.s32.totalorder %s105, %s108
      %p117 = scmp.eq.s32.totalorder %s19, 1
      %p118 = por %p116, %p117
      %p119 = scmp.ne.s32.totalorder %s108, %s109
      %p120 = scmp.eq.s32.totalorder %s19, 0
      %p121 = por %p119, %p120
      %p122 = scmp.ne.s32.totalorder %s108, %s109
      %p123 = scmp.eq.s32.totalorder %s20, 1
      %p124 = por %p122, %p123
      %p126 = scmp.ne.s32.totalorder %s109, %s125
      %p127 = scmp.eq.s32.totalorder %s20, 0
      %p128 = por %p126, %p127
      %p129 = scmp.le.s32.totalorder 1, %s14
      %p130 = scmp.lt.s32.totalorder %s14, 3
      %p131 = pnand %p129, %p130
      %p132 = pneg %p131
      // Predicated region
      $region9: #{tpu_custom_call.1} parent=5 // pred_check
        _
      $region10: #{tpu_custom_call.1} parent=5 // pred_check_branch
        %134 = sbr.rel (%p131) target = $region12
      $region11: #{tpu_custom_call.1} parent=5 // pred_region
        %s135 = ssub.s32 %s14, 1
      $region12: #{tpu_custom_call.1} parent=5 // pred_fallthru
        _
      %p136 = scmp.lt.s32.totalorder %s14, 2
      // Predicated region
      $region13: #{tpu_custom_call.1} parent=5 // pred_check
        %p137 = pneg %p136
      $region14: #{tpu_custom_call.1} parent=5 // pred_check_branch
        %139 = sbr.rel (%p137) target = $region16
      $region15: #{tpu_custom_call.1} parent=5 // pred_region
        // Predicated region
        $region17: #{tpu_custom_call.1} parent=15 // pred_check
          %p140 = pneg %p57
        $region18: #{tpu_custom_call.1} parent=15 // pred_check_branch
          %142 = sbr.rel (%p140) target = $region20
        $region19: #{tpu_custom_call.1} parent=15 // pred_region
          %s143 = sand.u32 %s47, 1
          %s144 = scalar_lea.sflag [#allocation4], %s143
          %s145 = sand.u32 %s47, 1
          %s146 = smul.addr %s145, 8
          %s147 = scalar_lea.vmem [#allocation3], %s146
          %s148 = sadd.s32 %s22, %s23
          %s149 = smul.u32 2, %s148
          %s151 = ssub.s32 128, 128
          %152 = vsyncadd %s144, %s151
          %s153 = smul.addr %s21, 2
          %s154 = sadd.s32 %s149, %s153
          %s155 = smul.addr %s154, 64
          %s156 = scalar_lea.hbm %s0, %s155
          %s158 = sshll.u32 %s147, 4
          %s159 = int_to_ptr.vmem [resolvable:$true] %s158
          %161 = dma.hbm_to_vmem [thread:$0]  %s156, 128, %s159, %s144
        $region20: #{tpu_custom_call.1} parent=15 // pred_fallthru
          _
        // Predicated region
        $region21: #{tpu_custom_call.1} parent=15 // pred_check
          %p162 = pneg %p87
        $region22: #{tpu_custom_call.1} parent=15 // pred_check_branch
          %164 = sbr.rel (%p162) target = $region24
        $region23: #{tpu_custom_call.1} parent=15 // pred_region
          %s165 = sand.u32 %s77, 1
          %s166 = scalar_lea.sflag [#allocation6], %s165
          %s167 = sand.u32 %s77, 1
          %s168 = smul.addr %s167, 2
          %s169 = scalar_lea.vmem [#allocation5], %s168
          %s170 = sadd.s32 %s22, %s23
          %s171 = smul.u32 2, %s170
          %s173 = ssub.s32 32, 32
          %174 = vsyncadd %s166, %s173
          %s175 = smul.addr %s21, 2
          %s176 = sadd.s32 %s171, %s175
          %s177 = smul.addr %s176, 16
          %s178 = scalar_lea.hbm %s1, %s177
          %s180 = sshll.u32 %s169, 4
          %s181 = int_to_ptr.vmem [resolvable:$true] %s180
          %183 = dma.hbm_to_vmem [thread:$0]  %s178, 32, %s181, %s166
        $region24: #{tpu_custom_call.1} parent=15 // pred_fallthru
          _
      $region16: #{tpu_custom_call.1} parent=5 // pred_fallthru
        _
      %p184 = scmp.le.s32.totalorder 1, %s14
      %p185 = scmp.lt.s32.totalorder %s14, 3
      %p186 = pnand %p184, %p185
      %p187 = pneg %p186
      // Predicated region
      $region25: #{tpu_custom_call.1} parent=5 // pred_check
        _
      $region26: #{tpu_custom_call.1} parent=5 // pred_check_branch
        %189 = sbr.rel (%p186) target = $region28
      $region27: #{tpu_custom_call.1} parent=5 // pred_region
        %s190 = ssub.s32 %s14, 1
        %s191 = sand.u32 %s50, 1
        %s192 = scalar_lea.sflag [#allocation4], %s191
        %s193 = sand.u32 %s50, 1
        %s194 = smul.addr %s193, 8
        %s195 = scalar_lea.vmem [#allocation3], %s194
        // Predicated region
        $region29: #{tpu_custom_call.1} parent=27 // pred_check
          %p196 = pneg %p63
        $region30: #{tpu_custom_call.1} parent=27 // pred_check_branch
          %198 = sbr.rel (%p196) target = $region32
        $region31: #{tpu_custom_call.1} parent=27 // pred_region
          %199 = dma.done %s192, 128
        $region32: #{tpu_custom_call.1} parent=27 // pred_fallthru
          _
        %s200 = sand.u32 %s80, 1
        %s201 = scalar_lea.sflag [#allocation6], %s200
        %s202 = sand.u32 %s80, 1
        %s203 = smul.addr %s202, 2
        %s204 = scalar_lea.vmem [#allocation5], %s203
        // Predicated region
        $region33: #{tpu_custom_call.1} parent=27 // pred_check
          %p205 = pneg %p93
        $region34: #{tpu_custom_call.1} parent=27 // pred_check_branch
          %207 = sbr.rel (%p205) target = $region36
        $region35: #{tpu_custom_call.1} parent=27 // pred_region
          %208 = dma.done %s201, 32
        $region36: #{tpu_custom_call.1} parent=27 // pred_fallthru
          _
        %s209 = sand.u32 %s50, 1
        %s210 = scalar_lea.sflag [#allocation4], %s209
        %s211 = sand.u32 %s50, 1
        %s212 = smul.addr %s211, 8
        %s213 = scalar_lea.vmem [#allocation3], %s212
        %p214 = pneg %p63
        %p215 = pneg %p60
        %s216 = sand.u32 %s80, 1
        %s217 = scalar_lea.sflag [#allocation6], %s216
        %s218 = sand.u32 %s80, 1
        %s219 = smul.addr %s218, 2
        %s220 = scalar_lea.vmem [#allocation5], %s219
        %p221 = pneg %p93
        %p222 = pneg %p90
        %p223 = pneg %p121
        %p224 = pneg %p118
        %s225 = sadd.s32 %s24, %s25
        %p226 = scmp.lt.s32.totalorder %s225, 1
        %s227 = scalar_select %p226, %s225, 1
        %s228 = scalar_lea.vmem %s2, %s227
        %s229 = sadd.s32 %s25, %s26
        %s230 = smul.u32 2, %s229
        %s231 = sadd.s32 %s25, %s26
        %s232 = smul.u32 2, %s231
        %s233 = sadd.s32 %s24, %s25
        %p234 = scmp.lt.s32.totalorder %s233, 1
        %s235 = scalar_select %p234, %s233, 1
        %s236 = scalar_lea.vmem %s2, %s235
        %s237 = sadd.s32 %s24, %s25
        %p238 = scmp.eq.s32.totalorder %s26, 0
        // Predicated region
        $region37: #{tpu_custom_call.1} parent=27 // pred_check
          %p239 = pneg %p238
        $region38: #{tpu_custom_call.1} parent=27 // pred_check_branch
          %241 = sbr.rel (%p239) target = $region40
        $region39: #{tpu_custom_call.1} parent=27 // pred_region
          %v242 = vlaneseq
          %vm243 = vcmp.ge.s32.totalorder %v242, 0
          %vm244 = vcmp.lt.s32.totalorder %v242, 256
          %vm245 = vmand %vm243, %vm244
          %246 = vst.msk [vmem:[#allocation2] sm:$0x3] %vm245, 0.0
        $region40: #{tpu_custom_call.1} parent=27 // pred_fallthru
          _
        %v247 = vld [vmem:[%s195] sm:$0xff]
        %v248 = vld [vmem:[%s204] sm:$0x3]
        %v250 = vcombine.high %v247, %v247
        %vm252 = vcmask 1043456
        %v253 = vsel %vm252, %v247, -inf
        %v254 = vrot.slane %v253, 4
        %v255 = vmax.f32 %v253, %v254
        %v256 = vrot.slane %v255, 2
        %v257 = vmax.f32 %v255, %v256
        %v258 = vrot.slane %v257, 1
        %v259 = vmax.f32 %v257, %v258
        %v260 = vsel %vm252, %v250, -inf
        %v261 = vrot.slane %v260, 4
        %v262 = vmax.f32 %v260, %v261
        %v263 = vrot.slane %v262, 2
        %v264 = vmax.f32 %v262, %v263
        %v265 = vrot.slane %v264, 1
        %v266 = vmax.f32 %v264, %v265
        %v269 = vcombine.low %v259, %v266
        %v271 = vsub.f32 %v247, %v269
        %v272 = vmul.f32 %v271, 1.442695
        %v273 = vpow.pop %v272
        %v275 = vcombine.high %v273, %v273
        %v277 = vsel %vm252, %v273, 0.0
        %v278 = vrot.slane %v277, 4
        %v279 = vadd.f32 %v277, %v278
        %v280 = vrot.slane %v279, 2
        %v281 = vadd.f32 %v279, %v280
        %v282 = vrot.slane %v281, 1
        %v283 = vadd.f32 %v281, %v282
        %v284 = vsel %vm252, %v275, 0.0
        %v285 = vrot.slane %v284, 4
        %v286 = vadd.f32 %v284, %v285
        %v287 = vrot.slane %v286, 2
        %v288 = vadd.f32 %v286, %v287
        %v289 = vrot.slane %v288, 1
        %v290 = vadd.f32 %v288, %v289
        %v291 = vlog2.pop %v283
        %v292 = vmul.f32 %v291, 0.6931472
        %v293 = vlog2.pop %v290
        %v294 = vmul.f32 %v293, 0.6931472
        %v295 = vadd.f32 %v259, %v292
        %v296 = vadd.f32 %v266, %v294
        %v297 = vlaneseq
        %v298 = vshrl.u32 %v297, 7
        %v299 = vlaneseq
        %v300 = vshrl.u32 %v299, 7
        %v301 = vsub.s32 0, %v300
        %v302 = vrot.slane %v248, %v301
        %v303 = vlaneseq
        %v304 = vshrl.u32 %v303, 7
        %v305 = vsub.s32 1, %v304
        %v306 = vrot.slane %v248, %v305
        %vm307 = vcmp.eq.s32.totalorder %v298, %v302
        %vm308 = vcmp.eq.s32.totalorder %v298, %v306
        %v309 = vsel %vm307, %v247, 0.0
        %v310 = vsel %vm308, %v250, 0.0
        %v311 = vsel %vm252, %v309, 0.0
        %v312 = vrot.slane %v311, 4
        %v313 = vadd.f32 %v311, %v312
        %v314 = vrot.slane %v313, 2
        %v315 = vadd.f32 %v313, %v314
        %v316 = vrot.slane %v315, 1
        %v317 = vadd.f32 %v315, %v316
        %v318 = vsel %vm252, %v310, 0.0
        %v319 = vrot.slane %v318, 4
        %v320 = vadd.f32 %v318, %v319
        %v321 = vrot.slane %v320, 2
        %v322 = vadd.f32 %v320, %v321
        %v323 = vrot.slane %v322, 1
        %v324 = vadd.f32 %v322, %v323
        %v325 = vsub.f32 %v295, %v317
        %v326 = vsub.f32 %v296, %v324
        %v327 = vld [vmem:[#allocation2] sm:$0x3]
        %v330 = vcombine.low %v325, %v326
        %v332 = vunpack.c.l.s4 1966171168
        %v333 = vunpack.c.0.s8 %v332
        %v334 = vlaneseq
        %v335 = vshrl.u32 %v334, 7
        %v336 = vsub.s32 %v333, %v335
        %v337 = vrot.slane %v330, %v336
        %v339 = vunpack.c.l.s4 1966171168
        %v340 = vunpack.c.0.s8 %v339
        %v341 = vlaneseq
        %v342 = vshrl.u32 %v341, 7
        %v343 = vsub.s32 %v340, %v342
        %v344 = vrot.slane %v337, %v343
        %v346 = vadd.f32 %v327, %v344
        %v347 = vlaneseq
        %vm348 = vcmp.ge.s32.totalorder %v347, 0
        %vm349 = vcmp.lt.s32.totalorder %v347, 256
        %vm350 = vmand %vm348, %vm349
        %351 = vst.msk [vmem:[#allocation2] sm:$0x3] %vm350, %v346
        // Predicated region
        $region41: #{tpu_custom_call.1} parent=27 // pred_check
          %p352 = pneg %p238
        $region42: #{tpu_custom_call.1} parent=27 // pred_check_branch
          %354 = sbr.rel (%p352) target = $region44
        $region43: #{tpu_custom_call.1} parent=27 // pred_region
          %v355 = vld [vmem:[#allocation2] sm:$0x3]
          %v357 = vlaneseq
          %v358 = vshrl.u32 %v357, 7
          %v359 = vsub.s32 0, %v358
          %v360 = vrot.slane %v355, %v359
          %v361 = vlaneseq
          %v362 = vshrl.u32 %v361, 7
          %v363 = vsub.s32 1, %v362
          %v364 = vrot.slane %v355, %v363
          %vm367 = vcmask 1040384
          %v368 = vsel %vm367, %v360, 0.0
          %v369 = vsel %vm367, %v364, 0.0
          %v370 = vadd.f32 %v368, %v369
          %371 = vadd.xlane.f32.xlu0 %v370
          %v372 = vpop.xlane.xlu0 %371
          %v373 = vrot.slane %v372, 4
          %v374 = vadd.f32 %v372, %v373
          %v375 = vrot.slane %v374, 2
          %v376 = vadd.f32 %v374, %v375
          %v377 = vrot.slane %v376, 1
          %v378 = vadd.f32 %v376, %v377
          %s379 = vtos %v378
          %v380 = vstv %s379
          %vm381 = vcmask 0
          %382 = vst.msk [vmem:[%s236] sm:$0x1] %vm381, %v380
        $region44: #{tpu_custom_call.1} parent=27 // pred_fallthru
          _
        %s383 = sadd.s32 %s24, %s25
        %p384 = scmp.lt.s32.totalorder %s383, 1
        %s385 = scalar_select %p384, %s383, 1
        %s386 = scalar_lea.vmem %s2, %s385
        // Predicated region
        $region45: #{tpu_custom_call.1} parent=27 // pred_check
          %p387 = pneg %p118
        $region46: #{tpu_custom_call.1} parent=27 // pred_check_branch
          %389 = sbr.rel (%p387) target = $region48
        $region47: #{tpu_custom_call.1} parent=27 // pred_region
          %s390 = sadd.s32 %s24, %s25
        $region48: #{tpu_custom_call.1} parent=27 // pred_fallthru
          _
      $region28: #{tpu_custom_call.1} parent=5 // pred_fallthru
        _
      %p391 = scmp.le.s32.totalorder 2, %s14
      // Predicated region
      $region49: #{tpu_custom_call.1} parent=5 // pred_check
        %p392 = pneg %p391
      $region50: #{tpu_custom_call.1} parent=5 // pred_check_branch
        %394 = sbr.rel (%p392) target = $region52
      $region51: #{tpu_custom_call.1} parent=5 // pred_region
        %s395 = ssub.s32 %s14, 2
        // Predicated region
        $region53: #{tpu_custom_call.1} parent=51 // pred_check
          %p396 = pneg %p124
        $region54: #{tpu_custom_call.1} parent=51 // pred_check_branch
          %398 = sbr.rel (%p396) target = $region56
        $region55: #{tpu_custom_call.1} parent=51 // pred_region
          %s399 = sadd.s32 %s27, %s28
          %p400 = scmp.lt.s32.totalorder %s399, 1
          %s401 = scalar_select %p400, %s399, 1
          %s402 = scalar_lea.vmem %s2, %s401
        $region56: #{tpu_custom_call.1} parent=51 // pred_fallthru
          _
      $region52: #{tpu_custom_call.1} parent=5 // pred_fallthru
        _
    $region6: #{tpu_custom_call.1} parent=1 // loop_footer
      %s18 = sadd.s32 1, %s14
    $region7: #{tpu_custom_call.1} parent=1 // loop_footer_branch
      %13 = sbr.rel target = $region3
    $region8: #{tpu_custom_call.1} parent=1 // loop_exit
      _
    %403 = vsyncpa [#allocation4], 1
    %s404 = scalar_lea.sflag [#allocation4], 1
    %405 = vsyncpa %s404, 1
    %406 = vsyncpa [#allocation6], 1
    %s407 = scalar_lea.sflag [#allocation6], 1
    %408 = vsyncpa %s407, 1

</llo_original>
